<compile_context>
chip_gen: v7x
topology: tpu7x:2x2x1
jax: 0.10.0
libtpu: 0.0.40
codegen_flags: <defaults>
</compile_context>

<pallas_src>
import functools

import jax
import jax.numpy as jnp
from jax import lax
from jax.experimental import pallas as pl
from jax.experimental.pallas import tpu as pltpu


def _angle_contrastive_kernel(x_ref, w_ref, b_ref, loss_ref, prec_ref, *,
                              matmul_in_bf16):
    # x_ref: (2, K, D); x_ref[0] = seg2 (= x[:,0,:]), x_ref[1] = seg1 (= x[:,1,:]).
    K = x_ref.shape[1]

    s1 = x_ref[1].astype(jnp.float32)    # (K, D) rows of the cos matrix
    s2 = x_ref[0].astype(jnp.float32)    # (K, D) cols of the cos matrix

    # Pre-normalize rows (rsqrt -> EUP slot) instead of dividing a K x K matrix by an
    # outer product of norms.  NOTE: F.cosine_similarity clamps the *product* of norms
    # at 1e-8; clamping each row norm at 1e-8 is equivalent for non-degenerate rows.
    eps = 1e-8
    inv_n1 = lax.rsqrt(jnp.maximum(jnp.sum(s1 * s1, axis=-1, keepdims=True), eps * eps))
    inv_n2 = lax.rsqrt(jnp.maximum(jnp.sum(s2 * s2, axis=-1, keepdims=True), eps * eps))
    s1n = s1 * inv_n1
    s2n = s2 * inv_n2

    w = w_ref[0]
    b = b_ref[0]
    # NOTE: torch.clamp(self.w, 1e-6) in the reference is not assigned back -> no-op.

    # Single MXU matmul: cos[i, j] = <s1n[i], s2n[j]>  (contract last dims, no transpose).
    if matmul_in_bf16:
        lhs, rhs = s1n.astype(jnp.bfloat16), s2n.astype(jnp.bfloat16)
    else:
        lhs, rhs = s1n, s2n
    dn = (((1,), (1,)), ((), ()))
    cos = lax.dot_general(lhs, rhs, dn, preferred_element_type=jnp.float32)   # (K, K)
    logits = cos * w + b                                                      # (K, K)

    # ---- diagonal (CE target term + accuracy), extracted from the MXU logits ----
    # Mask built from two length-K iotas broadcast to (K, K): no K^2 int32 arrays.
    diag_mask = (lax.broadcasted_iota(jnp.int32, (K, 1), 0) ==
                 lax.broadcasted_iota(jnp.int32, (1, K), 1))
    diag_m = jnp.where(diag_mask, logits, 0.0)                # one K^2 VPU select
    diag_row = jnp.sum(diag_m, axis=1, keepdims=True)         # (K, 1) = logits[i, i]
    diag_col = jnp.sum(diag_m, axis=0, keepdims=True)         # (1, K) = logits[j, j]
    mean_diag = jnp.mean(diag_row)

    # ---- single stabilized exp pass shared by both CE directions ----
    # logits are bounded by |w| + |b|, so one global shift is numerically safe.
    m_all = jnp.max(logits)                                   # scalar
    e = jnp.exp(logits - m_all)                               # (K, K), ONE exp pass
    lse_row = m_all + jnp.log(jnp.sum(e, axis=1, keepdims=True))   # (K, 1)
    lse_col = m_all + jnp.log(jnp.sum(e, axis=0, keepdims=True))   # (1, K)
    ce1 = jnp.mean(lse_row) - mean_diag
    ce2 = jnp.mean(lse_col) - mean_diag

    # ---- top-1 accuracy for both directions (maxima kept only for the argmax test) ----
    m_row = jnp.max(logits, axis=1, keepdims=True)            # (K, 1)
    m_col = jnp.max(logits, axis=0, keepdims=True)            # (1, K)
    acc1 = jnp.mean((diag_row >= m_row).astype(jnp.float32))
    acc2 = jnp.mean((diag_col >= m_col).astype(jnp.float32))

    # Scalar results -> SMEM (avoids masked 1-lane VMEM partial stores).
    loss_ref[0] = 0.5 * (ce1 + ce2)
    prec_ref[0] = 50.0 * (acc1 + acc2)


def angle_contrastive_loss(x, w, b, *, matmul_in_bf16=False):
    """x: (K, 2, D). Returns (nloss, prec) scalars (matches the PyTorch forward)."""
    K, two, D = x.shape
    assert two == 2
    # Dense slabs: one fusable HBM-bandwidth transpose in the wrapper so the kernel
    # only does contiguous (K, D) loads (no stride-2 sublane gathers).
    x2 = jnp.transpose(x, (1, 0, 2))                          # (2, K, D)
    w_arr = jnp.asarray(w, jnp.float32).reshape(1)
    b_arr = jnp.asarray(b, jnp.float32).reshape(1)

    itemsize = jnp.dtype(x.dtype).itemsize
    cost = pl.CostEstimate(
        flops=2 * K * K * D + 10 * K * K,
        transcendentals=K * K + 2 * K + 2,          # single exp pass + rsqrt + 2 logs
        bytes_accessed=2 * K * D * itemsize + 4 * 2 + 4 * 2,
    )

    # Estimated resident VMEM: x (raw + f32 + normalized) and ~3 K x K f32 temporaries
    # (logits, E, masked diag) plus slack.  Raise the scoped limit only when needed.
    est_vmem = 4 * (3 * 2 * K * D + 3 * K * K) + (1 << 20)
    compiler_params = None
    if est_vmem > (32 << 20):
        compiler_params = pltpu.CompilerParams(
            vmem_limit_bytes=min(est_vmem, 100 << 20))

    kernel = functools.partial(_angle_contrastive_kernel,
                               matmul_in_bf16=matmul_in_bf16)

    loss, prec = pl.pallas_call(
        kernel,
        out_shape=(jax.ShapeDtypeStruct((1,), jnp.float32),
                   jax.ShapeDtypeStruct((1,), jnp.float32)),
        in_specs=[
            pl.BlockSpec(memory_space=pltpu.MemorySpace.VMEM),   # x (full array)
            pl.BlockSpec(memory_space=pltpu.MemorySpace.SMEM),   # w scalar
            pl.BlockSpec(memory_space=pltpu.MemorySpace.SMEM),   # b scalar
        ],
        out_specs=(
            pl.BlockSpec(memory_space=pltpu.MemorySpace.SMEM),   # loss scalar
            pl.BlockSpec(memory_space=pltpu.MemorySpace.SMEM),   # prec scalar
        ),
        cost_estimate=cost,
        compiler_params=compiler_params,
    )(x2, w_arr, b_arr)
    return loss[0], prec[0]


def _reference(x, w, b):
    """Pure-JAX reference matching the PyTorch forward."""
    seg1 = x[:, 1, :]
    seg2 = x[:, 0, :]
    K = seg1.shape[0]
    dots = seg1 @ seg2.T
    n1 = jnp.linalg.norm(seg1, axis=-1, keepdims=True)
    n2 = jnp.linalg.norm(seg2, axis=-1, keepdims=True)
    cos = dots / jnp.maximum(n1 * n2.T, 1e-8)
    l1 = cos * w + b
    l2 = cos.T * w + b
    labels = jnp.arange(K)

    def ce(l):
        return jnp.mean(jax.nn.logsumexp(l, axis=-1) - l[labels, labels])

    def acc(l):
        return 100.0 * jnp.mean((jnp.argmax(l, axis=-1) == labels).astype(jnp.float32))

    return 0.5 * (ce(l1) + ce(l2)), 0.5 * (acc(l1) + acc(l2))


if __name__ == "__main__":
    # Module __init__ defaults and deterministic small inputs.
    init_w, init_b = 10.0, -5.0
    K, D = 8, 32
    key = jax.random.PRNGKey(0)
    x = jax.random.normal(key, (K, 2, D), dtype=jnp.float32)

    loss, prec = angle_contrastive_loss(x, init_w, init_b)
    jax.block_until_ready((loss, prec))

    ref_loss, ref_prec = _reference(x, init_w, init_b)
    assert jnp.allclose(loss, ref_loss, atol=1e-4, rtol=1e-4), (loss, ref_loss)
    assert jnp.allclose(prec, ref_prec, atol=1e-4), (prec, ref_prec)

    print("KERNEL_OK")
</pallas_src>

<mosaic_0001>
module attributes {stable_mosaic.version = 11 : i64} {
  func.func @_angle_contrastive_kernel(%arg0: memref<2x8x32xf32, #tpu.memory_space<vmem>>, %arg1: memref<1xf32, #tpu.memory_space<smem>>, %arg2: memref<1xf32, #tpu.memory_space<smem>>, %arg3: memref<1xf32, #tpu.memory_space<smem>>, %arg4: memref<1xf32, #tpu.memory_space<smem>>) attributes {dimension_semantics = [], scalar_prefetch = 0 : i64, scratch_operands = 0 : i64, tpu.core_type = #tpu.core_type<tc>} {
    %c1 = arith.constant 1 : index
    %c0 = arith.constant 0 : index
    %c0_0 = arith.constant 0 : index
    %0 = vector.load %arg0[%c1, %c0, %c0_0] : memref<2x8x32xf32, #tpu.memory_space<vmem>>, vector<1x8x32xf32>
    %1 = vector.shape_cast %0 : vector<1x8x32xf32> to vector<8x32xf32>
    %c0_1 = arith.constant 0 : index
    %c0_2 = arith.constant 0 : index
    %c0_3 = arith.constant 0 : index
    %2 = vector.load %arg0[%c0_1, %c0_2, %c0_3] : memref<2x8x32xf32, #tpu.memory_space<vmem>>, vector<1x8x32xf32>
    %3 = vector.shape_cast %2 : vector<1x8x32xf32> to vector<8x32xf32>
    %4 = arith.mulf %1, %1 : vector<8x32xf32>
    %cst = arith.constant dense<0.000000e+00> : vector<8xf32>
    %5 = vector.multi_reduction <add>, %4, %cst [1] : vector<8x32xf32> to vector<8xf32>
    %6 = vector.shape_cast %5 : vector<8xf32> to vector<8x1xf32>
    %cst_4 = arith.constant 1.000000e-16 : f32
    %7 = vector.broadcast %cst_4 : f32 to vector<8x1xf32>
    %8 = arith.maximumf %6, %7 : vector<8x1xf32>
    %9 = math.rsqrt %8 : vector<8x1xf32>
    %10 = arith.mulf %3, %3 : vector<8x32xf32>
    %cst_5 = arith.constant dense<0.000000e+00> : vector<8xf32>
    %11 = vector.multi_reduction <add>, %10, %cst_5 [1] : vector<8x32xf32> to vector<8xf32>
    %12 = vector.shape_cast %11 : vector<8xf32> to vector<8x1xf32>
    %cst_6 = arith.constant 1.000000e-16 : f32
    %13 = vector.broadcast %cst_6 : f32 to vector<8x1xf32>
    %14 = arith.maximumf %12, %13 : vector<8x1xf32>
    %15 = math.rsqrt %14 : vector<8x1xf32>
    %16 = vector.broadcast %9 : vector<8x1xf32> to vector<8x32xf32>
    %17 = arith.mulf %1, %16 : vector<8x32xf32>
    %18 = vector.broadcast %15 : vector<8x1xf32> to vector<8x32xf32>
    %19 = arith.mulf %3, %18 : vector<8x32xf32>
    %c0_7 = arith.constant 0 : index
    %20 = memref.load %arg1[%c0_7] : memref<1xf32, #tpu.memory_space<smem>>
    %c0_8 = arith.constant 0 : index
    %21 = memref.load %arg2[%c0_8] : memref<1xf32, #tpu.memory_space<smem>>
    %cst_9 = arith.constant dense<0.000000e+00> : vector<8x8xf32>
    %22 = tpu.matmul %17, %19, %cst_9 {dimension_numbers = #tpu.dot_dimension_numbers<[1], [1], [0], [0], [0, 0, 1, 0], [], []>} : vector<8x32xf32>, vector<8x32xf32>, vector<8x8xf32> -> vector<8x8xf32>
    %23 = vector.broadcast %20 : f32 to vector<8x8xf32>
    %24 = arith.mulf %22, %23 : vector<8x8xf32>
    %25 = vector.broadcast %21 : f32 to vector<8x8xf32>
    %26 = arith.addf %24, %25 : vector<8x8xf32>
    %27 = tpu.iota {dimensions = array<i32: 0>} : vector<8x1xi32>
    %28 = tpu.iota {dimensions = array<i32: 1>} : vector<1x8xi32>
    %29 = vector.broadcast %27 : vector<8x1xi32> to vector<8x8xi32>
    %30 = vector.broadcast %28 : vector<1x8xi32> to vector<8x8xi32>
    %31 = arith.cmpi eq, %29, %30 : vector<8x8xi32>
    %cst_10 = arith.constant 0.000000e+00 : f32
    %32 = vector.broadcast %cst_10 : f32 to vector<8x8xf32>
    %33 = arith.select %31, %26, %32 : vector<8x8xi1>, vector<8x8xf32>
    %cst_11 = arith.constant dense<0.000000e+00> : vector<8xf32>
    %34 = vector.multi_reduction <add>, %33, %cst_11 [1] : vector<8x8xf32> to vector<8xf32>
    %35 = vector.shape_cast %34 : vector<8xf32> to vector<8x1xf32>
    %cst_12 = arith.constant dense<0.000000e+00> : vector<8xf32>
    %36 = vector.multi_reduction <add>, %33, %cst_12 [0] : vector<8x8xf32> to vector<8xf32>
    %37 = vector.shape_cast %36 : vector<8xf32> to vector<1x8xf32>
    %38 = vector.shape_cast %35 : vector<8x1xf32> to vector<1x8x1xf32>
    %cst_13 = arith.constant dense<0.000000e+00> : vector<1xf32>
    %39 = vector.multi_reduction <add>, %38, %cst_13 [1, 2] : vector<1x8x1xf32> to vector<1xf32>
    %40 = vector.shape_cast %39 : vector<1xf32> to vector<1x1x1xf32>
    %41 = vector.extract %40[0, 0, 0] : f32 from vector<1x1x1xf32>
    %cst_14 = arith.constant 8.000000e+00 : f32
    %42 = arith.divf %41, %cst_14 : f32
    %43 = vector.shape_cast %26 : vector<8x8xf32> to vector<1x8x8xf32>
    %cst_15 = arith.constant dense<0xFF800000> : vector<1xf32>
    %44 = vector.multi_reduction <maximumf>, %43, %cst_15 [1, 2] : vector<1x8x8xf32> to vector<1xf32>
    %45 = vector.shape_cast %44 : vector<1xf32> to vector<1x1x1xf32>
    %46 = vector.extract %45[0, 0, 0] : f32 from vector<1x1x1xf32>
    %47 = vector.broadcast %46 : f32 to vector<8x8xf32>
    %48 = arith.subf %26, %47 : vector<8x8xf32>
    %49 = math.exp %48 : vector<8x8xf32>
    %cst_16 = arith.constant dense<0.000000e+00> : vector<8xf32>
    %50 = vector.multi_reduction <add>, %49, %cst_16 [1] : vector<8x8xf32> to vector<8xf32>
    %51 = vector.shape_cast %50 : vector<8xf32> to vector<8x1xf32>
    %52 = math.log %51 : vector<8x1xf32>
    %53 = vector.broadcast %46 : f32 to vector<8x1xf32>
    %54 = arith.addf %53, %52 : vector<8x1xf32>
    %cst_17 = arith.constant dense<0.000000e+00> : vector<8xf32>
    %55 = vector.multi_reduction <add>, %49, %cst_17 [0] : vector<8x8xf32> to vector<8xf32>
    %56 = vector.shape_cast %55 : vector<8xf32> to vector<1x8xf32>
    %57 = math.log %56 : vector<1x8xf32>
    %58 = vector.broadcast %46 : f32 to vector<1x8xf32>
    %59 = arith.addf %58, %57 : vector<1x8xf32>
    %60 = vector.shape_cast %54 : vector<8x1xf32> to vector<1x8x1xf32>
    %cst_18 = arith.constant dense<0.000000e+00> : vector<1xf32>
    %61 = vector.multi_reduction <add>, %60, %cst_18 [1, 2] : vector<1x8x1xf32> to vector<1xf32>
    %62 = vector.shape_cast %61 : vector<1xf32> to vector<1x1x1xf32>
    %63 = vector.extract %62[0, 0, 0] : f32 from vector<1x1x1xf32>
    %cst_19 = arith.constant 8.000000e+00 : f32
    %64 = arith.divf %63, %cst_19 : f32
    %65 = arith.subf %64, %42 : f32
    %66 = vector.shape_cast %59 : vector<1x8xf32> to vector<1x1x8xf32>
    %cst_20 = arith.constant dense<0.000000e+00> : vector<1xf32>
    %67 = vector.multi_reduction <add>, %66, %cst_20 [1, 2] : vector<1x1x8xf32> to vector<1xf32>
    %68 = vector.shape_cast %67 : vector<1xf32> to vector<1x1x1xf32>
    %69 = vector.extract %68[0, 0, 0] : f32 from vector<1x1x1xf32>
    %cst_21 = arith.constant 8.000000e+00 : f32
    %70 = arith.divf %69, %cst_21 : f32
    %71 = arith.subf %70, %42 : f32
    %cst_22 = arith.constant dense<0xFF800000> : vector<8xf32>
    %72 = vector.multi_reduction <maximumf>, %26, %cst_22 [1] : vector<8x8xf32> to vector<8xf32>
    %73 = vector.shape_cast %72 : vector<8xf32> to vector<8x1xf32>
    %cst_23 = arith.constant dense<0xFF800000> : vector<8xf32>
    %74 = vector.multi_reduction <maximumf>, %26, %cst_23 [0] : vector<8x8xf32> to vector<8xf32>
    %75 = vector.shape_cast %74 : vector<8xf32> to vector<1x8xf32>
    %76 = arith.cmpf oge, %35, %73 : vector<8x1xf32>
    %77 = arith.extui %76 : vector<8x1xi1> to vector<8x1xi32>
    %78 = arith.sitofp %77 : vector<8x1xi32> to vector<8x1xf32>
    %79 = vector.shape_cast %78 : vector<8x1xf32> to vector<1x8x1xf32>
    %cst_24 = arith.constant dense<0.000000e+00> : vector<1xf32>
    %80 = vector.multi_reduction <add>, %79, %cst_24 [1, 2] : vector<1x8x1xf32> to vector<1xf32>
    %81 = vector.shape_cast %80 : vector<1xf32> to vector<1x1x1xf32>
    %82 = vector.extract %81[0, 0, 0] : f32 from vector<1x1x1xf32>
    %cst_25 = arith.constant 8.000000e+00 : f32
    %83 = arith.divf %82, %cst_25 : f32
    %84 = arith.cmpf oge, %37, %75 : vector<1x8xf32>
    %85 = arith.extui %84 : vector<1x8xi1> to vector<1x8xi32>
    %86 = arith.sitofp %85 : vector<1x8xi32> to vector<1x8xf32>
    %87 = vector.shape_cast %86 : vector<1x8xf32> to vector<1x1x8xf32>
    %cst_26 = arith.constant dense<0.000000e+00> : vector<1xf32>
    %88 = vector.multi_reduction <add>, %87, %cst_26 [1, 2] : vector<1x1x8xf32> to vector<1xf32>
    %89 = vector.shape_cast %88 : vector<1xf32> to vector<1x1x1xf32>
    %90 = vector.extract %89[0, 0, 0] : f32 from vector<1x1x1xf32>
    %cst_27 = arith.constant 8.000000e+00 : f32
    %91 = arith.divf %90, %cst_27 : f32
    %92 = arith.addf %65, %71 : f32
    %cst_28 = arith.constant 5.000000e-01 : f32
    %93 = arith.mulf %cst_28, %92 : f32
    %c0_29 = arith.constant 0 : index
    %94 = memref.load %arg3[%c0_29] : memref<1xf32, #tpu.memory_space<smem>>
    memref.store %93, %arg3[%c0_29] : memref<1xf32, #tpu.memory_space<smem>>
    %95 = arith.addf %83, %91 : f32
    %cst_30 = arith.constant 5.000000e+01 : f32
    %96 = arith.mulf %cst_30, %95 : f32
    %c0_31 = arith.constant 0 : index
    %97 = memref.load %arg4[%c0_31] : memref<1xf32, #tpu.memory_space<smem>>
    memref.store %96, %arg4[%c0_31] : memref<1xf32, #tpu.memory_space<smem>>
    return
  }
}

</mosaic_0001>

<llo_original>
// kernel: tpu_custom_call.1
$region0: #{tpu_custom_call.1}
  #allocation0 [shape = 'u32[]', space=smem, size = 0x4, offset = 0x4, fixed_abs, tag = 'smem constant byte address 0x4 - core index']
  #allocation1 [shape = 'u32[144,128]{1,0:T(1,128)}', space=vmem, size = 0x12000, scoped, tag = 'internal scratch']
  #allocation2 [shape = 'f32[1]{0:T(128)S(6)}', space=smem, size = 0x200, scoped, tag = 'scoped memory for tpu_custom_call.1']
  #allocation3 [shape = 'f32[1]{0:T(128)S(6)}', space=smem, size = 0x200, scoped, tag = 'scoped memory for tpu_custom_call.1']
  %s0 = inlined_call_operand.hbm [shape: f32[2,8,32], index: 0, kind: input, shape index: {}]
  %s1 = inlined_call_operand.<no memory space> [shape: f32[1], index: 1, kind: input, shape index: {}]
  %s2 = inlined_call_operand.<no memory space> [shape: f32[1], index: 2, kind: input, shape index: {}]
  %s3 = inlined_call_operand.hbm [shape: f32[1], index: 3, kind: output, shape index: {0}]
  %s4 = inlined_call_operand.hbm [shape: f32[1], index: 4, kind: output, shape index: {1}]
  %5 = xla_tuple %s3, %s4
  %s6 = sld [smem:[#allocation0]]
  $region34: #{tpu_custom_call.1} parent=0
    _
  %s8 = ssub.s32 1, %s6
  %s9 = scalar_select 0, %s8, %s6
  %10 = sst [smem:[#allocation2]] %s1
  %11 = sst [smem:[#allocation3]] %s2
  $region1: #{tpu_custom_call.1} parent=0
    #allocation4 [shape = 'u8[8192]{0}', space=vmem, size = 0x2000, scoped, tag = 'input window, operand 0, single buffered']
    #allocation5 [shape = 's32[1]{0}', space=sflag, size = 0x4, scoped, tag = 'scoped memory for tpu_custom_call.1']
    #allocation6 [shape = 's32[1]{0}', space=sflag, size = 0x4, scoped, tag = 'scoped memory for tpu_custom_call.1']
    #allocation7 [shape = 'u8[512]{0}', space=smem, size = 0x200, scoped, tag = 'output window, operand 0, single buffered']
    #allocation8 [shape = 'u8[512]{0}', space=smem, size = 0x200, scoped, tag = 'output window, operand 1, single buffered']
    #allocation9 [shape = 's32[1]{0}', space=sflag, size = 0x4, scoped, tag = 'scoped memory for tpu_custom_call.1']
    %12 = vsyncpa [#allocation5], 0
    %13 = vsyncpa [#allocation6], 0
    %14 = vsyncpa [#allocation9], 0
    // Predicated region
    $region2: #{tpu_custom_call.1} parent=1 // pred_check
      _
    $region3: #{tpu_custom_call.1} parent=1 // pred_check_branch
      %16 = sbr.rel (0) target = $region5
    $region4: #{tpu_custom_call.1} parent=1 // pred_region
      %s18 = ssub.s32 256, 256
      %19 = vsyncadd [#allocation5], %s18
      %s20 = sshll.u32 [#allocation4], 4
      %s21 = int_to_ptr.vmem [resolvable:$true] %s20
      %26 = dma.hbm_to_vmem [thread:$0]  %s0, 256, %s21, [#allocation5], 128, 128, 8
    $region5: #{tpu_custom_call.1} parent=1 // pred_fallthru
      _
    // Predicated region
    $region6: #{tpu_custom_call.1} parent=1 // pred_check
      _
    $region7: #{tpu_custom_call.1} parent=1 // pred_check_branch
      %28 = sbr.rel (0) target = $region9
    $region8: #{tpu_custom_call.1} parent=1 // pred_region
      _
    $region9: #{tpu_custom_call.1} parent=1 // pred_fallthru
      _
    // Predicated region
    $region10: #{tpu_custom_call.1} parent=1 // pred_check
      _
    $region11: #{tpu_custom_call.1} parent=1 // pred_check_branch
      %30 = sbr.rel (0) target = $region13
    $region12: #{tpu_custom_call.1} parent=1 // pred_region
      _
    $region13: #{tpu_custom_call.1} parent=1 // pred_fallthru
      _
    // Predicated region
    $region14: #{tpu_custom_call.1} parent=1 // pred_check
      _
    $region15: #{tpu_custom_call.1} parent=1 // pred_check_branch
      %32 = sbr.rel (0) target = $region17
    $region16: #{tpu_custom_call.1} parent=1 // pred_region
      %33 = dma.done [#allocation5], 256
    $region17: #{tpu_custom_call.1} parent=1 // pred_fallthru
      _
    %s34 = scalar_lea.vmem [#allocation4], 8
    %v35 = vld [vmem:[%s34] sm:$0xff]
    %v36 = vld [vmem:[#allocation4] sm:$0xff]
    %v37 = vmul.f32 %v35, %v35
    %vm38 = vcmask 261120
    %v39 = vsel %vm38, %v37, 0.0
    %40 = vadd.xlane.f32.xlu0 %v39
    %v41 = vpop.xlane.xlu0 %40
    %v42 = vmax.f32 %v41, 1e-16
    %v43 = vrsqrt.pop %v42
    %v44 = vmul.f32 %v36, %v36
    %v45 = vsel %vm38, %v44, 0.0
    %46 = vadd.xlane.f32.xlu0 %v45
    %v47 = vpop.xlane.xlu0 %46
    %v48 = vmax.f32 %v47, 1e-16
    %v49 = vrsqrt.pop %v48
    %v50 = vmul.f32 %v35, %v43
    %v51 = vmul.f32 %v36, %v49
    %s52 = sld [smem:[#allocation2]]
    %s53 = sld [smem:[#allocation3]]
    %v55 = vsel %vm38, %v50, 0
    %v58 = vsel %vm38, %v51, 0
    %60 = vmatprep.subr.mxu0 0.0
    %61 = vmatpush1.xpose.msra.mxu0 %v58
    %62 = vmatprep.subr.mxu0 0.0
    %63 = vmatpush1.xpose.msra.mxu0 0.0
    %64 = vmatprep.subr.mxu0 0.0
    %65 = vmatpush1.xpose.msra.mxu0 0.0
    %66 = vmatprep.subr.mxu0 0.0
    %67 = vmatpush1.xpose.msra.mxu0 0.0
    %68 = vmatprep.subr.mxu0 0.0
    %69 = vmatpush1.xpose.msra.mxu0 0.0
    %70 = vmatprep.subr.mxu0 0.0
    %71 = vmatpush1.xpose.msra.mxu0 0.0
    %72 = vmatprep.subr.mxu0 0.0
    %73 = vmatpush1.xpose.msra.mxu0 0.0
    %74 = vmatprep.subr.mxu0 0.0
    %75 = vmatpush1.xpose.msra.mxu0 0.0
    %76 = vmatprep.subr.mxu0 0.0
    %77 = vmatpush1.xpose.msra.mxu0 0.0
    %78 = vmatprep.subr.mxu0 0.0
    %79 = vmatpush1.xpose.msra.mxu0 0.0
    %80 = vmatprep.subr.mxu0 0.0
    %81 = vmatpush1.xpose.msra.mxu0 0.0
    %82 = vmatprep.subr.mxu0 0.0
    %83 = vmatpush1.xpose.msra.mxu0 0.0
    %84 = vmatprep.subr.mxu0 0.0
    %85 = vmatpush1.xpose.msra.mxu0 0.0
    %86 = vmatprep.subr.mxu0 0.0
    %87 = vmatpush1.xpose.msra.mxu0 0.0
    %88 = vmatprep.subr.mxu0 0.0
    %89 = vmatpush1.xpose.msra.mxu0 0.0
    %90 = vmatprep.subr.mxu0 0.0
    %91 = vmatpush1.xpose.msra.mxu0 0.0
    %92 = vmatprep.subr.mxu0 0.0
    %93 = vmatpush1.xpose.msra.mxu0 0.0
    %94 = vmatprep.subr.mxu0 0.0
    %95 = vmatpush1.xpose.msra.mxu0 0.0
    %96 = vmatprep.subr.mxu0 0.0
    %97 = vmatpush1.xpose.msra.mxu0 0.0
    %98 = vmatprep.subr.mxu0 0.0
    %99 = vmatpush1.xpose.msra.mxu0 0.0
    %100 = vmatprep.subr.mxu0 0.0
    %101 = vmatpush1.xpose.msra.mxu0 0.0
    %102 = vmatprep.subr.mxu0 0.0
    %103 = vmatpush1.xpose.msra.mxu0 0.0
    %104 = vmatprep.subr.mxu0 0.0
    %105 = vmatpush1.xpose.msra.mxu0 0.0
    %106 = vmatprep.subr.mxu0 0.0
    %107 = vmatpush1.xpose.msra.mxu0 0.0
    %108 = vmatprep.subr.mxu0 0.0
    %109 = vmatpush1.xpose.msra.mxu0 0.0
    %110 = vmatprep.subr.mxu0 0.0
    %111 = vmatpush1.xpose.msra.mxu0 0.0
    %112 = vmatprep.subr.mxu0 0.0
    %113 = vmatpush1.xpose.msra.mxu0 0.0
    %114 = vmatprep.subr.mxu0 0.0
    %115 = vmatpush1.xpose.msra.mxu0 0.0
    %116 = vmatprep.subr.mxu0 0.0
    %117 = vmatpush1.xpose.msra.mxu0 0.0
    %118 = vmatprep.subr.mxu0 0.0
    %119 = vmatpush1.xpose.msra.mxu0 0.0
    %120 = vmatprep.subr.mxu0 0.0
    %121 = vmatpush1.xpose.msra.mxu0 0.0
    %122 = vmatprep.subr.mxu0 0.0
    %123 = vmatpush1.xpose.msra.mxu0 0.0
    %124 = vmatprep.mubr.f32.mxu0 0.0
    %125 = vmatmul.mubr.f32.gmra.mrb[0].mxu0 %v55
    %v126 = vpop.f32.mrb[0].mxu0
    %v127 = vadd.f32 0.0, %v126
    %v128 = vpop.f32.mrb[0].mxu0
    %129 = vdwg.mxu0
    %v130 = vstv %s52
    %v131 = vmul.f32 %v127, %v130
    %v132 = vstv %s53
    %v133 = vadd.f32 %v131, %v132
    %v134 = vlaneseq
    %v135 = vshrl.u32 %v134, 7
    %v136 = vlaneseq
    %v137 = vand.u32 %v136, 127
    %vm138 = vcmp.eq.s32.totalorder %v135, %v137
    %v139 = vsel %vm138, %v133, 0.0
    %vm140 = vcmask 64512
    %v141 = vsel %vm140, %v139, 0.0
    %142 = vadd.xlane.f32.xlu0 %v141
    %v143 = vpop.xlane.xlu0 %142
    %v144 = vrot.slane %v141, 4
    %v145 = vadd.f32 %v141, %v144
    %v146 = vrot.slane %v145, 2
    %v147 = vadd.f32 %v145, %v146
    %v148 = vrot.slane %v147, 1
    %v149 = vadd.f32 %v147, %v148
    %vm150 = vcmask 7168
    %v151 = vsel %vm150, %v143, 0.0
    %152 = vadd.xlane.f32.xlu0 %v151
    %v153 = vpop.xlane.xlu0 %152
    %v154 = vrot.slane %v153, 4
    %v155 = vadd.f32 %v153, %v154
    %v156 = vrot.slane %v155, 2
    %v157 = vadd.f32 %v155, %v156
    %v158 = vrot.slane %v157, 1
    %v159 = vadd.f32 %v157, %v158
    %s160 = vtos %v159
    %v161 = vrcp.pop 8.0
    %s162 = vtos %v161
    %s163 = smul.f32 %s160, %s162
    %v164 = vsel %vm140, %v133, -inf
    %165 = vmax.xlane.f32.xlu0 %v164
    %v166 = vpop.xlane.xlu0 %165
    %v167 = vrot.slane %v166, 4
    %v168 = vmax.f32 %v166, %v167
    %v169 = vrot.slane %v168, 2
    %v170 = vmax.f32 %v168, %v169
    %v171 = vrot.slane %v170, 1
    %v172 = vmax.f32 %v170, %v171
    %s173 = vtos %v172
    %v174 = vstv %s173
    %v175 = vsub.f32 %v133, %v174
    %v176 = vmul.f32 %v175, 1.442695
    %v177 = vpow.pop %v176
    %v178 = vsel %vm140, %v177, 0.0
    %179 = vadd.xlane.f32.xlu0 %v178
    %v180 = vpop.xlane.xlu0 %179
    %v181 = vlog2.pop %v180
    %v182 = vmul.f32 %v181, 0.6931472
    %v183 = vadd.f32 %v174, %v182
    %v184 = vrot.slane %v178, 4
    %v185 = vadd.f32 %v178, %v184
    %v186 = vrot.slane %v185, 2
    %v187 = vadd.f32 %v185, %v186
    %v188 = vrot.slane %v187, 1
    %v189 = vadd.f32 %v187, %v188
    %v190 = vlog2.pop %v189
    %v191 = vmul.f32 %v190, 0.6931472
    %v192 = vadd.f32 %v174, %v191
    %v193 = vsel %vm150, %v183, 0.0
    %194 = vadd.xlane.f32.xlu0 %v193
    %v195 = vpop.xlane.xlu0 %194
    %v196 = vrot.slane %v195, 4
    %v197 = vadd.f32 %v195, %v196
    %v198 = vrot.slane %v197, 2
    %v199 = vadd.f32 %v197, %v198
    %v200 = vrot.slane %v199, 1
    %v201 = vadd.f32 %v199, %v200
    %s202 = vtos %v201
    %v203 = vrcp.pop 8.0
    %s204 = vtos %v203
    %s205 = smul.f32 %s202, %s204
    %s206 = ssub.f32 %s205, %s163
    %vm207 = vcmask 57344
    %v208 = vsel %vm207, %v192, 0.0
    %209 = vadd.xlane.f32.xlu0 %v208
    %v210 = vpop.xlane.xlu0 %209
    %v211 = vrot.slane %v210, 4
    %v212 = vadd.f32 %v210, %v211
    %v213 = vrot.slane %v212, 2
    %v214 = vadd.f32 %v212, %v213
    %v215 = vrot.slane %v214, 1
    %v216 = vadd.f32 %v214, %v215
    %s217 = vtos %v216
    %v218 = vrcp.pop 8.0
    %s219 = vtos %v218
    %s220 = smul.f32 %s217, %s219
    %s221 = ssub.f32 %s220, %s163
    %v222 = vrot.slane %v164, 4
    %v223 = vmax.f32 %v164, %v222
    %v224 = vrot.slane %v223, 2
    %v225 = vmax.f32 %v223, %v224
    %v226 = vrot.slane %v225, 1
    %v227 = vmax.f32 %v225, %v226
    %vm228 = vcmp.ge.f32.partialorder %v143, %v166
    %v229 = vsel %vm228, 1, 0
    %v230 = vcvt.s32.f32 %v229
    %v231 = vsel %vm150, %v230, 0.0
    %232 = vadd.xlane.f32.xlu0 %v231
    %v233 = vpop.xlane.xlu0 %232
    %v234 = vrot.slane %v233, 4
    %v235 = vadd.f32 %v233, %v234
    %v236 = vrot.slane %v235, 2
    %v237 = vadd.f32 %v235, %v236
    %v238 = vrot.slane %v237, 1
    %v239 = vadd.f32 %v237, %v238
    %s240 = vtos %v239
    %v241 = vrcp.pop 8.0
    %s242 = vtos %v241
    %s243 = smul.f32 %s240, %s242
    %vm244 = vcmp.ge.f32.partialorder %v149, %v227
    %v245 = vsel %vm244, 1, 0
    %v246 = vcvt.s32.f32 %v245
    %v247 = vsel %vm207, %v246, 0.0
    %248 = vadd.xlane.f32.xlu0 %v247
    %v249 = vpop.xlane.xlu0 %248
    %v250 = vrot.slane %v249, 4
    %v251 = vadd.f32 %v249, %v250
    %v252 = vrot.slane %v251, 2
    %v253 = vadd.f32 %v251, %v252
    %v254 = vrot.slane %v253, 1
    %v255 = vadd.f32 %v253, %v254
    %s256 = vtos %v255
    %v257 = vrcp.pop 8.0
    %s258 = vtos %v257
    %s259 = smul.f32 %s256, %s258
    %s260 = sadd.f32 %s206, %s221
    %s261 = smul.f32 %s260, 0.5
    %s262 = scalar_lea.smem [#allocation7], 0
    %263 = sst [smem:[%s262]] %s261
    %s264 = sadd.f32 %s243, %s259
    %s265 = smul.f32 %s264, 50.0
    %s266 = scalar_lea.smem [#allocation8], 0
    %267 = sst [smem:[%s266]] %s265
    // Predicated region
    $region18: #{tpu_custom_call.1} parent=1 // pred_check
      _
    $region19: #{tpu_custom_call.1} parent=1 // pred_check_branch
      %269 = sbr.rel (0) target = $region21
    $region20: #{tpu_custom_call.1} parent=1 // pred_region
      %s271 = ssub.s32 16, 16
      %272 = vsyncadd [#allocation6], %s271
      %275 = dma.smem_to_hbm [#allocation7], 16, %s3, [#allocation6]
    $region21: #{tpu_custom_call.1} parent=1 // pred_fallthru
      _
    // Predicated region
    $region22: #{tpu_custom_call.1} parent=1 // pred_check
      _
    $region23: #{tpu_custom_call.1} parent=1 // pred_check_branch
      %277 = sbr.rel (0) target = $region25
    $region24: #{tpu_custom_call.1} parent=1 // pred_region
      %s279 = ssub.s32 16, 16
      %280 = vsyncadd [#allocation9], %s279
      %283 = dma.smem_to_hbm [#allocation8], 16, %s4, [#allocation9]
    $region25: #{tpu_custom_call.1} parent=1 // pred_fallthru
      _
    // Predicated region
    $region26: #{tpu_custom_call.1} parent=1 // pred_check
      _
    $region27: #{tpu_custom_call.1} parent=1 // pred_check_branch
      %285 = sbr.rel (0) target = $region29
    $region28: #{tpu_custom_call.1} parent=1 // pred_region
      %286 = dma.done [#allocation6], 16
    $region29: #{tpu_custom_call.1} parent=1 // pred_fallthru
      _
    // Predicated region
    $region30: #{tpu_custom_call.1} parent=1 // pred_check
      _
    $region31: #{tpu_custom_call.1} parent=1 // pred_check_branch
      %288 = sbr.rel (0) target = $region33
    $region32: #{tpu_custom_call.1} parent=1 // pred_region
      %289 = dma.done [#allocation9], 16
    $region33: #{tpu_custom_call.1} parent=1 // pred_fallthru
      _
    %290 = sfence
    %291 = vsyncpa [#allocation5], 1
    %292 = vsyncpa [#allocation6], 1
    %293 = vsyncpa [#allocation9], 1

</llo_original>
